<compile_context>
chip_gen: v5e
topology: v5e:2x2
jax: 0.10.0
libtpu: 0.0.40
codegen_flags: <defaults>
</compile_context>

<pallas_src>
import functools
import math

import jax
import jax.numpy as jnp
from jax.experimental import pallas as pl
from jax.experimental.pallas import tpu as pltpu

_MAX_BLOCK_BYTES = 4 * 1024 * 1024     # per block; 2 arrays x 2 buffers = 16 MiB VMEM
_FASTPATH_ELEMS = 1024                 # below this, pure-jnp (XLA fuses the 4-op chain)


def _reg_loss_kernel(x_ref, o_ref, *, mode, alpha, beta, batch_size):
    # Compute in f32 regardless of I/O dtype (v5e's VPU/EUP has no bf16).
    x = x_ref[...].astype(jnp.float32)
    if mode == "mul":
        # log(x / bs) == log(x) - log(bs): folds the true divide into a
        # compile-time constant subtraction (one fewer EUP op per element).
        base = jnp.log(x)
        if batch_size != 1.0:
            base = base - jnp.float32(math.log(batch_size))
    else:  # "add"
        if batch_size != 1.0:
            x = x * jnp.float32(1.0 / batch_size)
        base = x

    if float(beta).is_integer():
        # Integer exponent: torch `**` handles negative bases; keep jnp.power.
        powed = jnp.power(base, jnp.float32(beta))
    else:
        # Fractional exponent: exp(beta*log(base)).  log(base<0) -> NaN and
        # exp(beta*log(0)) -> 0, both matching torch's `**` semantics, without
        # lax.pow's chain of special-case compares/selects.
        powed = jnp.exp(jnp.float32(beta) * jnp.log(base))

    o_ref[...] = (jnp.float32(alpha) * powed).astype(o_ref.dtype)


def _reg_loss_jnp(perf_cost, batch_size, mode, alpha, beta):
    """Fused pure-jnp fast path for tiny inputs (scalar accumulated cost)."""
    x = perf_cost.astype(jnp.float32) / jnp.float32(batch_size)
    base = jnp.log(x) if mode == "mul" else x
    out = jnp.float32(alpha) * jnp.power(base, jnp.float32(beta))
    return out.astype(perf_cost.dtype)


def regularizer_loss(perf_cost, batch_size=1, *, mode="mul", alpha=0.2, beta=0.6):
    """Pallas implementation of RegularizerLoss.forward.

    perf_cost  : array of any shape (elementwise), incl. the scalar accumulated
                 cost that FBNet typically passes.
    batch_size : static Python number (as in the torch forward signature).
    """
    if mode not in ("mul", "add"):
        raise NotImplementedError(mode)

    perf_cost = jnp.asarray(perf_cost)
    orig_shape = perf_cost.shape
    dtype = perf_cost.dtype
    n = int(perf_cost.size)

    # Tiny inputs: pallas_call launch + HBM round trip costs more than the op.
    if n < _FASTPATH_ELEMS:
        return _reg_loss_jnp(perf_cost, batch_size, mode, alpha, beta)

    flat = jnp.reshape(perf_cost, (-1,))           # native dtype, no host cast

    # Lane-dense slab: widest lane width dividing n => usually no pad/slice.
    lane_w = next((c for c in (1024, 512, 256, 128) if n % c == 0), 1024)
    pad = (-n) % lane_w
    if pad:
        # Pad value == batch_size => x == 1 => log == 0 => 0**beta == 0
        # (NaN-free in both modes); padded lanes are sliced off below.
        flat = jnp.pad(flat, (0, pad), constant_values=float(batch_size))
    rows = (n + pad) // lane_w
    slab = flat.reshape(rows, lane_w)

    itemsize = jnp.dtype(dtype).itemsize
    sub = {4: 8, 2: 16, 1: 32}.get(itemsize, 8)    # sublane packing per dtype
    max_rows = max(sub, (_MAX_BLOCK_BYTES // (lane_w * itemsize)) // sub * sub)

    if rows <= sub:
        tile_r = rows                              # single full-extent block
    else:
        # Aim for >= 4 row-blocks so the "parallel" axis shards across v7x's
        # two TensorCores (neutral on v5e/v6e); cap each block at 4 MiB.
        want = pl.cdiv(pl.cdiv(rows, 4), sub) * sub
        tile_r = max(sub, min(max_rows, want))
    grid = (pl.cdiv(rows, tile_r),)                # ragged last block is masked

    kernel = functools.partial(
        _reg_loss_kernel, mode=mode, alpha=float(alpha), beta=float(beta),
        batch_size=float(batch_size))

    out = pl.pallas_call(
        kernel,
        out_shape=jax.ShapeDtypeStruct((rows, lane_w), dtype),   # native dtype I/O
        grid_spec=pltpu.PrefetchScalarGridSpec(
            num_scalar_prefetch=0,
            grid=grid,
            in_specs=[pl.BlockSpec((tile_r, lane_w), lambda i: (i, 0))],
            out_specs=pl.BlockSpec((tile_r, lane_w), lambda i: (i, 0)),
        ),
        compiler_params=pltpu.CompilerParams(
            dimension_semantics=("parallel",),      # shard blocks across v7x's 2 TCs
            vmem_limit_bytes=32 * 1024 * 1024,      # v5e default is 16 MiB; keep 32
        ),
    )(slab)

    if pad:
        out = out.reshape(-1)[:n]
    return out.reshape(orig_shape)


def _reference(perf_cost, batch_size, mode, alpha, beta):
    x = perf_cost.astype(jnp.float32) / batch_size
    if mode == "mul":
        return alpha * (jnp.log(x) ** beta)
    elif mode == "add":
        return alpha * (x ** beta)
    raise NotImplementedError(mode)


if __name__ == "__main__":
    # Deterministic config (mirrors FBNet-style NAS config attributes).
    class Config:
        mode = "mul"
        alpha = 0.2
        beta = 0.6

    key = jax.random.PRNGKey(0)
    k0, k1, k2, k3 = jax.random.split(key, 4)
    batch_size = 4

    # Keep perf_cost / batch_size > 1 so log(x) > 0 and the fractional power
    # is well-defined (no NaN), matching positive latency costs in FBNet.
    def make_cost(k, shape):
        return batch_size * (1.5 + jax.random.uniform(k, shape, dtype=jnp.float32) * 8.0)

    # mode = 'mul' (single-block slab)
    pc_mul = make_cost(k0, (16, 256))
    out_mul = jax.block_until_ready(
        regularizer_loss(pc_mul, batch_size,
                         mode=Config.mode, alpha=Config.alpha, beta=Config.beta))
    ref_mul = _reference(pc_mul, batch_size, "mul", Config.alpha, Config.beta)
    assert out_mul.shape == pc_mul.shape
    assert jnp.allclose(out_mul, ref_mul, rtol=1e-4, atol=1e-6), "mul mode mismatch"

    # mode = 'add' (multi-block grid: rows=32 -> 4 row-blocks)
    pc_add = make_cost(k1, (64, 512))
    out_add = jax.block_until_ready(
        regularizer_loss(pc_add, batch_size, mode="add",
                         alpha=Config.alpha, beta=Config.beta))
    ref_add = _reference(pc_add, batch_size, "add", Config.alpha, Config.beta)
    assert jnp.allclose(out_add, ref_add, rtol=1e-4, atol=1e-6), "add mode mismatch"

    # Ragged element count (exercises the <lane_w pad + tail-slice path).
    pc_rag = make_cost(k2, (37, 200))
    out_rag = jax.block_until_ready(
        regularizer_loss(pc_rag, batch_size, mode="mul",
                         alpha=Config.alpha, beta=Config.beta))
    ref_rag = _reference(pc_rag, batch_size, "mul", Config.alpha, Config.beta)
    assert out_rag.shape == pc_rag.shape
    assert jnp.allclose(out_rag, ref_rag, rtol=1e-4, atol=1e-6), "ragged mismatch"

    # bf16 input: native-dtype I/O through the kernel, f32 compute inside.
    pc_bf = make_cost(k3, (32, 64)).astype(jnp.bfloat16)
    out_bf = jax.block_until_ready(
        regularizer_loss(pc_bf, batch_size, mode="add",
                         alpha=Config.alpha, beta=Config.beta))
    ref_bf = _reference(pc_bf, batch_size, "add", Config.alpha, Config.beta)
    assert out_bf.dtype == jnp.bfloat16
    assert jnp.allclose(out_bf.astype(jnp.float32), ref_bf,
                        rtol=2e-2, atol=2e-2), "bf16 mismatch"

    # Scalar accumulated cost (the typical FBNet call) -> pure-jnp fast path.
    scalar_cost = jnp.float32(37.5)
    out_s = jax.block_until_ready(
        regularizer_loss(scalar_cost, batch_size, mode="mul",
                         alpha=Config.alpha, beta=Config.beta))
    ref_s = _reference(scalar_cost, batch_size, "mul", Config.alpha, Config.beta)
    assert out_s.shape == ()
    assert jnp.allclose(out_s, ref_s, rtol=1e-4, atol=1e-6), "scalar mismatch"

    print("KERNEL_OK")
</pallas_src>

<mosaic_0001>
module attributes {stable_mosaic.version = 11 : i64} {
  func.func @_reg_loss_kernel(%arg0: i32, %arg1: memref<4x1024xf32, #tpu.memory_space<vmem>>, %arg2: memref<4x1024xf32, #tpu.memory_space<vmem>>) attributes {dimension_semantics = [#tpu.dimension_semantics<parallel>], iteration_bounds = array<i64: 1>, scalar_prefetch = 0 : i64, scratch_operands = 0 : i64, tpu.core_type = #tpu.core_type<tc>, window_params = [{transform_indices = @transform_0, window_bounds = array<i64: 4, 1024>}, {transform_indices = @transform_1, window_bounds = array<i64: 4, 1024>}]} {
    %c0 = arith.constant 0 : index
    %c0_0 = arith.constant 0 : index
    %0 = vector.load %arg1[%c0, %c0_0] : memref<4x1024xf32, #tpu.memory_space<vmem>>, vector<4x1024xf32>
    %1 = math.log %0 : vector<4x1024xf32>
    %cst = arith.constant 1.38629436 : f32
    %2 = vector.broadcast %cst : f32 to vector<4x1024xf32>
    %3 = arith.subf %1, %2 : vector<4x1024xf32>
    %4 = math.log %3 : vector<4x1024xf32>
    %cst_1 = arith.constant 6.000000e-01 : f32
    %5 = vector.broadcast %cst_1 : f32 to vector<4x1024xf32>
    %6 = arith.mulf %5, %4 : vector<4x1024xf32>
    %7 = math.exp %6 : vector<4x1024xf32>
    %cst_2 = arith.constant 2.000000e-01 : f32
    %8 = vector.broadcast %cst_2 : f32 to vector<4x1024xf32>
    %9 = arith.mulf %8, %7 : vector<4x1024xf32>
    %c0_3 = arith.constant 0 : index
    %c0_4 = arith.constant 0 : index
    %10 = vector.load %arg2[%c0_3, %c0_4] : memref<4x1024xf32, #tpu.memory_space<vmem>>, vector<4x1024xf32>
    tpu.vector_store %arg2[%c0_3, %c0_4], %9 {strides = array<i32>} : memref<4x1024xf32, #tpu.memory_space<vmem>>, vector<4x1024xf32>,
    return
  }
  func.func @transform_0(%arg0: i32) -> (i32, i32) {
    %c0_i32 = arith.constant 0 : i32
    %c0_i32_0 = arith.constant 0 : i32
    return %arg0, %c0_i32 : i32, i32
  }
  func.func @transform_1(%arg0: i32) -> (i32, i32) {
    %c0_i32 = arith.constant 0 : i32
    %c0_i32_0 = arith.constant 0 : i32
    return %arg0, %c0_i32 : i32, i32
  }
}

</mosaic_0001>

<llo_original>
// kernel: tpu_custom_call.1
$region0: #{tpu_custom_call.1}
  #allocation0 [shape = 'u32[]', space=smem, size = 0x4, offset = 0x4, fixed_abs, tag = 'smem constant byte address 0x4 - core index']
  #allocation1 [shape = 'u32[72,128]{1,0:T(1,128)}', space=vmem, size = 0x9000, scoped, tag = 'internal scratch']
  %s0 = inlined_call_operand.hbm [shape: f32[4,1024], index: 0, kind: input, shape index: {}]
  %s1 = inlined_call_operand.hbm [shape: f32[4,1024], index: 1, kind: output, shape index: {}]
  %s2 = sld [smem:[#allocation0]]
  $region18: #{tpu_custom_call.1} parent=0
    _
  %s4 = ssub.s32 1, %s2
  %s5 = scalar_select 0, %s4, %s2
  $region1: #{tpu_custom_call.1} parent=0
    #allocation2 [shape = 'u8[16384]{0}', space=vmem, size = 0x4000, scoped, tag = 'input window, operand 0, single buffered']
    #allocation3 [shape = 's32[1]{0}', space=sflag, size = 0x4, scoped, tag = 'scoped memory for tpu_custom_call.1']
    #allocation4 [shape = 's32[1]{0}', space=sflag, size = 0x4, scoped, tag = 'scoped memory for tpu_custom_call.1']
    #allocation5 [shape = 'u8[16384]{0}', space=vmem, size = 0x4000, scoped, tag = 'output window, operand 0, single buffered']
    %6 = vsyncpa [#allocation3], 0
    %7 = vsyncpa [#allocation4], 0
    // Predicated region
    $region2: #{tpu_custom_call.1} parent=1 // pred_check
      _
    $region3: #{tpu_custom_call.1} parent=1 // pred_check_branch
      %9 = sbr.rel (0) target = $region5
    $region4: #{tpu_custom_call.1} parent=1 // pred_region
      %11 = vsyncadd [#allocation3], 0
      %s13 = sshll.u32 %s0, 4
      %s14 = int_to_ptr.hbm [resolvable:$true] %s13
      %s15 = sshll.u32 [#allocation2], 4
      %s16 = int_to_ptr.vmem [resolvable:$true] %s15
      %18 = dma.hbm_to_vmem [thread:$0]  %s14, 512, %s16, [#allocation3]
    $region5: #{tpu_custom_call.1} parent=1 // pred_fallthru
      _
    // Predicated region
    $region6: #{tpu_custom_call.1} parent=1 // pred_check
      _
    $region7: #{tpu_custom_call.1} parent=1 // pred_check_branch
      %20 = sbr.rel (0) target = $region9
    $region8: #{tpu_custom_call.1} parent=1 // pred_region
      %22 = dma.done [#allocation3], 512
    $region9: #{tpu_custom_call.1} parent=1 // pred_fallthru
      _
    %v23 = vld [vmem:[#allocation2] sm:$0xff]
    %v24 = vld [vmem:[#allocation2 + $0x8] sm:$0xff]
    %v25 = vld [vmem:[#allocation2 + $0x10] sm:$0xff]
    %v26 = vld [vmem:[#allocation2 + $0x18] sm:$0xff]
    %v27 = vlog2.pop %v23
    %v28 = vmul.f32 %v27, 0.6931472
    %v29 = vlog2.pop %v24
    %v30 = vmul.f32 %v29, 0.6931472
    %v31 = vlog2.pop %v25
    %v32 = vmul.f32 %v31, 0.6931472
    %v33 = vlog2.pop %v26
    %v34 = vmul.f32 %v33, 0.6931472
    %v35 = vsub.f32 %v28, 1.3862944
    %v36 = vsub.f32 %v30, 1.3862944
    %v37 = vsub.f32 %v32, 1.3862944
    %v38 = vsub.f32 %v34, 1.3862944
    %v39 = vlog2.pop %v35
    %v40 = vmul.f32 %v39, 0.6931472
    %v41 = vlog2.pop %v36
    %v42 = vmul.f32 %v41, 0.6931472
    %v43 = vlog2.pop %v37
    %v44 = vmul.f32 %v43, 0.6931472
    %v45 = vlog2.pop %v38
    %v46 = vmul.f32 %v45, 0.6931472
    %v47 = vmul.f32 %v40, 0.6
    %v48 = vmul.f32 %v42, 0.6
    %v49 = vmul.f32 %v44, 0.6
    %v50 = vmul.f32 %v46, 0.6
    %v51 = vmul.f32 %v47, 1.442695
    %v52 = vpow.pop %v51
    %v53 = vmul.f32 %v48, 1.442695
    %v54 = vpow.pop %v53
    %v55 = vmul.f32 %v49, 1.442695
    %v56 = vpow.pop %v55
    %v57 = vmul.f32 %v50, 1.442695
    %v58 = vpow.pop %v57
    %v59 = vmul.f32 %v52, 0.2
    %v60 = vmul.f32 %v54, 0.2
    %v61 = vmul.f32 %v56, 0.2
    %v62 = vmul.f32 %v58, 0.2
    %63 = vst [vmem:[#allocation5] sm:$0xff] %v59
    %64 = vst [vmem:[#allocation5 + $0x8] sm:$0xff] %v60
    %65 = vst [vmem:[#allocation5 + $0x10] sm:$0xff] %v61
    %66 = vst [vmem:[#allocation5 + $0x18] sm:$0xff] %v62
    // Predicated region
    $region10: #{tpu_custom_call.1} parent=1 // pred_check
      _
    $region11: #{tpu_custom_call.1} parent=1 // pred_check_branch
      %68 = sbr.rel (0) target = $region13
    $region12: #{tpu_custom_call.1} parent=1 // pred_region
      %70 = vsyncadd [#allocation4], 0
      %s72 = sshll.u32 [#allocation5], 4
      %s73 = int_to_ptr.vmem [resolvable:$true] %s72
      %s74 = sshll.u32 %s1, 4
      %s75 = int_to_ptr.hbm [resolvable:$true] %s74
      %77 = dma.vmem_to_hbm [thread:$0]  %s73, 512, %s75, [#allocation4]
    $region13: #{tpu_custom_call.1} parent=1 // pred_fallthru
      _
    // Predicated region
    $region14: #{tpu_custom_call.1} parent=1 // pred_check
      _
    $region15: #{tpu_custom_call.1} parent=1 // pred_check_branch
      %79 = sbr.rel (0) target = $region17
    $region16: #{tpu_custom_call.1} parent=1 // pred_region
      %81 = dma.done [#allocation4], 512
    $region17: #{tpu_custom_call.1} parent=1 // pred_fallthru
      _
    %82 = vsyncpa [#allocation3], 1
    %83 = vsyncpa [#allocation4], 1

</llo_original>
